<compile_context>
chip_gen: v6e
topology: v6e:2x2x1
jax: 0.10.0
libtpu: 0.0.40
codegen_flags: <defaults>
</compile_context>

<pallas_src>
import jax
import jax.numpy as jnp
from jax.experimental import pallas as pl
from jax.experimental.pallas import tpu as pltpu


def _keypoint_kernel(frm_ref, emo_ref, w1_ref, w2_ref, b_ref, out_ref):
    # One batch tile per grid step.
    #   frm_ref: (TB, F1), emo_ref: (TB, F2)
    #   w1_ref:  (F1, O),  w2_ref:  (F2, O),  b_ref: (1, O)
    #   out_ref: (TB, O)
    y = (
        jnp.dot(frm_ref[...], w1_ref[...], preferred_element_type=jnp.float32)
        + jnp.dot(emo_ref[...], w2_ref[...], preferred_element_type=jnp.float32)
        + b_ref[...]
    )
    out_ref[...] = y.astype(out_ref.dtype)


def _keypoint_forward(frm, emo, w1, w2, b2d, *, block_b):
    """frm: (B, F1), emo: (B, F2); w1: (F1, O), w2: (F2, O), b2d: (1, O)."""
    B, f1 = frm.shape
    _, f2 = emo.shape
    out_dim = w1.shape[1]

    # Batch tile: multiple of 8 (f32 sublane) for the tiled path; for small B
    # take the whole batch as one block (block == full dim is always legal).
    tb = B if B <= block_b else block_b
    grid = (pl.cdiv(B, tb),)

    itemsize = jnp.dtype(frm.dtype).itemsize
    cost = pl.CostEstimate(
        flops=2 * B * (f1 + f2) * out_dim,
        transcendentals=0,
        bytes_accessed=(
            B * (f1 + f2 + out_dim) * itemsize          # inputs + output
            + (f1 + f2) * out_dim * itemsize            # weights
            + out_dim * itemsize                        # bias
        ),
    )

    return pl.pallas_call(
        _keypoint_kernel,
        out_shape=jax.ShapeDtypeStruct((B, out_dim), frm.dtype),
        grid=grid,
        in_specs=[
            pl.BlockSpec((tb, f1), lambda i: (i, 0)),       # batch-tiled
            pl.BlockSpec((tb, f2), lambda i: (i, 0)),       # batch-tiled
            pl.BlockSpec((f1, out_dim), lambda i: (0, 0)),  # VMEM-resident
            pl.BlockSpec((f2, out_dim), lambda i: (0, 0)),  # VMEM-resident
            pl.BlockSpec((1, out_dim), lambda i: (0, 0)),   # VMEM-resident
        ],
        out_specs=pl.BlockSpec((tb, out_dim), lambda i: (i, 0)),
        compiler_params=pltpu.CompilerParams(
            dimension_semantics=("parallel",),  # shard batch tiles across TCs (v7x)
        ),
        cost_estimate=cost,
    )(frm, emo, w1, w2, b2d)


def make_keypoint_estimator(weight, bias, num_frm_features, *, block_b=1024):
    """Build a jitted forward(frm, emo) for nn.Linear(10, 2) on cat([frm, emo], 1).

    weight: (2, 10)  (PyTorch nn.Linear layout), bias: (2,).
    The weight split / transpose / bias reshape are done once here, not per call.
    """
    assert block_b % 8 == 0, "batch tile must be a multiple of the f32 sublane (8)"
    out_dim, in_features = weight.shape
    f1 = num_frm_features
    assert 0 < f1 < in_features

    # Hoisted out of the per-call hot path (done once).
    w1 = jnp.asarray(weight[:, :f1]).T                     # (F1, out_dim)
    w2 = jnp.asarray(weight[:, f1:]).T                     # (F2, out_dim)
    b2d = jnp.asarray(bias).reshape(1, out_dim)            # (1, out_dim)

    @jax.jit
    def forward(frm, emo):
        return _keypoint_forward(frm, emo, w1, w2, b2d, block_b=block_b)

    return forward


if __name__ == "__main__":
    key = jax.random.PRNGKey(0)
    k_frm, k_emo, k_w, k_b = jax.random.split(key, 4)

    B, F1, F2 = 2, 6, 4   # F1 + F2 = 10 in_features of the Linear layer
    frm = jax.random.normal(k_frm, (B, F1), dtype=jnp.float32)
    emo = jax.random.normal(k_emo, (B, F2), dtype=jnp.float32)

    # Deterministic parameters (nn.Linear(10, 2): weight (2, 10), bias (2,)).
    weight = jax.random.normal(k_w, (2, 10), dtype=jnp.float32) * 0.1
    bias = jax.random.normal(k_b, (2,), dtype=jnp.float32) * 0.1

    forward = make_keypoint_estimator(weight, bias, num_frm_features=F1)

    # --- small-shape path (single full-extent block) ---
    out = forward(frm, emo)
    jax.block_until_ready(out)
    ref = jnp.concatenate([frm, emo], axis=1) @ weight.T + bias
    assert out.shape == (B, 2)
    assert jnp.allclose(out, ref, atol=1e-5, rtol=1e-5)

    # --- tiled path (exercises grid over batch + a partial last tile) ---
    Bt = 2056  # 2 full 1024-row tiles + one partial tile
    k1, k2 = jax.random.split(jax.random.PRNGKey(1))
    frm_t = jax.random.normal(k1, (Bt, F1), dtype=jnp.float32)
    emo_t = jax.random.normal(k2, (Bt, F2), dtype=jnp.float32)
    out_t = forward(frm_t, emo_t)
    jax.block_until_ready(out_t)
    ref_t = jnp.concatenate([frm_t, emo_t], axis=1) @ weight.T + bias
    assert out_t.shape == (Bt, 2)
    assert jnp.allclose(out_t, ref_t, atol=1e-5, rtol=1e-5)

    print("KERNEL_OK")
</pallas_src>

<mosaic_0001>
module attributes {stable_mosaic.version = 11 : i64} {
  func.func @_keypoint_kernel(%arg0: i32, %arg1: memref<2x6xf32, #tpu.memory_space<vmem>>, %arg2: memref<2x4xf32, #tpu.memory_space<vmem>>, %arg3: memref<6x2xf32, #tpu.memory_space<vmem>>, %arg4: memref<4x2xf32, #tpu.memory_space<vmem>>, %arg5: memref<1x2xf32, #tpu.memory_space<vmem>>, %arg6: memref<2x2xf32, #tpu.memory_space<vmem>>) attributes {dimension_semantics = [#tpu.dimension_semantics<parallel>], iteration_bounds = array<i64: 1>, scalar_prefetch = 0 : i64, scratch_operands = 0 : i64, tpu.core_type = #tpu.core_type<tc>, window_params = [{transform_indices = @transform_0, window_bounds = array<i64: 2, 6>}, {transform_indices = @transform_1, window_bounds = array<i64: 2, 4>}, {pipeline_mode = #tpu.pipeline_mode<synchronous>, transform_indices = @transform_2, window_bounds = array<i64: 6, 2>}, {pipeline_mode = #tpu.pipeline_mode<synchronous>, transform_indices = @transform_3, window_bounds = array<i64: 4, 2>}, {pipeline_mode = #tpu.pipeline_mode<synchronous>, transform_indices = @transform_4, window_bounds = array<i64: 1, 2>}, {transform_indices = @transform_5, window_bounds = array<i64: 2, 2>}]} {
    %c0 = arith.constant 0 : index
    %c0_0 = arith.constant 0 : index
    %0 = vector.load %arg1[%c0, %c0_0] : memref<2x6xf32, #tpu.memory_space<vmem>>, vector<2x6xf32>
    %c0_1 = arith.constant 0 : index
    %c0_2 = arith.constant 0 : index
    %1 = vector.load %arg3[%c0_1, %c0_2] : memref<6x2xf32, #tpu.memory_space<vmem>>, vector<6x2xf32>
    %cst = arith.constant dense<0.000000e+00> : vector<2x2xf32>
    %2 = tpu.matmul %0, %1, %cst {dimension_numbers = #tpu.dot_dimension_numbers<[1], [0], [0], [1], [0, 0, 1, 1], [], []>} : vector<2x6xf32>, vector<6x2xf32>, vector<2x2xf32> -> vector<2x2xf32>
    %c0_3 = arith.constant 0 : index
    %c0_4 = arith.constant 0 : index
    %3 = vector.load %arg2[%c0_3, %c0_4] : memref<2x4xf32, #tpu.memory_space<vmem>>, vector<2x4xf32>
    %c0_5 = arith.constant 0 : index
    %c0_6 = arith.constant 0 : index
    %4 = vector.load %arg4[%c0_5, %c0_6] : memref<4x2xf32, #tpu.memory_space<vmem>>, vector<4x2xf32>
    %cst_7 = arith.constant dense<0.000000e+00> : vector<2x2xf32>
    %5 = tpu.matmul %3, %4, %cst_7 {dimension_numbers = #tpu.dot_dimension_numbers<[1], [0], [0], [1], [0, 0, 1, 1], [], []>} : vector<2x4xf32>, vector<4x2xf32>, vector<2x2xf32> -> vector<2x2xf32>
    %6 = arith.addf %2, %5 : vector<2x2xf32>
    %c0_8 = arith.constant 0 : index
    %c0_9 = arith.constant 0 : index
    %7 = vector.load %arg5[%c0_8, %c0_9] : memref<1x2xf32, #tpu.memory_space<vmem>>, vector<1x2xf32>
    %8 = vector.broadcast %7 : vector<1x2xf32> to vector<2x2xf32>
    %9 = arith.addf %6, %8 : vector<2x2xf32>
    %c0_10 = arith.constant 0 : index
    %c0_11 = arith.constant 0 : index
    %10 = vector.load %arg6[%c0_10, %c0_11] : memref<2x2xf32, #tpu.memory_space<vmem>>, vector<2x2xf32>
    tpu.vector_store %arg6[%c0_10, %c0_11], %9 {strides = array<i32>} : memref<2x2xf32, #tpu.memory_space<vmem>>, vector<2x2xf32>,
    return
  }
  func.func @transform_0(%arg0: i32) -> (i32, i32) {
    %c0_i32 = arith.constant 0 : i32
    %c0_i32_0 = arith.constant 0 : i32
    return %arg0, %c0_i32 : i32, i32
  }
  func.func @transform_1(%arg0: i32) -> (i32, i32) {
    %c0_i32 = arith.constant 0 : i32
    %c0_i32_0 = arith.constant 0 : i32
    return %arg0, %c0_i32 : i32, i32
  }
  func.func @transform_2(%arg0: i32) -> (i32, i32) {
    %c0_i32 = arith.constant 0 : i32
    %c0_i32_0 = arith.constant 0 : i32
    %c0_i32_1 = arith.constant 0 : i32
    return %c0_i32, %c0_i32_0 : i32, i32
  }
  func.func @transform_3(%arg0: i32) -> (i32, i32) {
    %c0_i32 = arith.constant 0 : i32
    %c0_i32_0 = arith.constant 0 : i32
    %c0_i32_1 = arith.constant 0 : i32
    return %c0_i32, %c0_i32_0 : i32, i32
  }
  func.func @transform_4(%arg0: i32) -> (i32, i32) {
    %c0_i32 = arith.constant 0 : i32
    %c0_i32_0 = arith.constant 0 : i32
    %c0_i32_1 = arith.constant 0 : i32
    return %c0_i32, %c0_i32_0 : i32, i32
  }
  func.func @transform_5(%arg0: i32) -> (i32, i32) {
    %c0_i32 = arith.constant 0 : i32
    %c0_i32_0 = arith.constant 0 : i32
    return %arg0, %c0_i32 : i32, i32
  }
}

</mosaic_0001>

<llo_original>
// kernel: forward.1
$region0: #{forward.1}
  #allocation0 [shape = 'u32[]', space=smem, size = 0x4, offset = 0x4, fixed_abs, tag = 'smem constant byte address 0x4 - core index']
  #allocation1 [shape = 'u32[144,128]{1,0:T(1,128)}', space=vmem, size = 0x12000, scoped, tag = 'internal scratch']
  %s0 = inlined_call_operand.hbm [shape: f32[2,6], index: 0, kind: input, shape index: {}]
  %s1 = inlined_call_operand.hbm [shape: f32[2,4], index: 1, kind: input, shape index: {}]
  %s2 = inlined_call_operand.hbm [shape: f32[6,2], index: 2, kind: input, shape index: {}]
  %s3 = inlined_call_operand.vmem [shape: f32[4,2], index: 3, kind: input, shape index: {}]
  %s4 = inlined_call_operand.vmem [shape: f32[1,2], index: 4, kind: input, shape index: {}]
  %s5 = inlined_call_operand.hbm [shape: f32[2,2], index: 5, kind: output, shape index: {}]
  %s6 = sld [smem:[#allocation0]]
  $region42: #{forward.1} parent=0
    _
  %s8 = ssub.s32 1, %s6
  %s9 = scalar_select 0, %s8, %s6
  $region1: #{forward.1} parent=0
    #allocation2 [shape = 'u8[1024]{0}', space=vmem, size = 0x400, scoped, tag = 'input window, operand 0, single buffered']
    #allocation3 [shape = 's32[1]{0}', space=sflag, size = 0x4, scoped, tag = 'scoped memory for forward.1']
    #allocation4 [shape = 's32[1]{0}', space=sflag, size = 0x4, scoped, tag = 'scoped memory for forward.1']
    #allocation5 [shape = 'u8[1024]{0}', space=vmem, size = 0x400, scoped, tag = 'input window, operand 1, single buffered']
    #allocation6 [shape = 's32[1]{0}', space=sflag, size = 0x4, scoped, tag = 'scoped memory for forward.1']
    #allocation7 [shape = 'u8[4096]{0}', space=vmem, size = 0x1000, scoped, tag = 'input window, operand 2, single buffered']
    #allocation8 [shape = 'u8[1024]{0}', space=vmem, size = 0x400, scoped, tag = 'output window, operand 0, single buffered']
    %10 = vsyncpa [#allocation3], 0
    %11 = vsyncpa [#allocation6], 0
    %12 = vsyncpa [#allocation4], 0
    // Predicated region
    $region2: #{forward.1} parent=1 // pred_check
      _
    $region3: #{forward.1} parent=1 // pred_check_branch
      %14 = sbr.rel (0) target = $region5
    $region4: #{forward.1} parent=1 // pred_region
      %s16 = ssub.s32 32, 32
      %17 = vsyncadd [#allocation3], %s16
      %s19 = sshll.u32 [#allocation2], 4
      %s20 = int_to_ptr.vmem [resolvable:$true] %s19
      %22 = dma.hbm_to_vmem [thread:$0]  %s0, 32, %s20, [#allocation3]
    $region5: #{forward.1} parent=1 // pred_fallthru
      _
    // Predicated region
    $region6: #{forward.1} parent=1 // pred_check
      _
    $region7: #{forward.1} parent=1 // pred_check_branch
      %24 = sbr.rel (0) target = $region9
    $region8: #{forward.1} parent=1 // pred_region
      %s26 = ssub.s32 32, 32
      %27 = vsyncadd [#allocation6], %s26
      %s29 = sshll.u32 [#allocation5], 4
      %s30 = int_to_ptr.vmem [resolvable:$true] %s29
      %32 = dma.hbm_to_vmem [thread:$0]  %s1, 32, %s30, [#allocation6]
    $region9: #{forward.1} parent=1 // pred_fallthru
      _
    // Predicated region
    $region10: #{forward.1} parent=1 // pred_check
      _
    $region11: #{forward.1} parent=1 // pred_check_branch
      %34 = sbr.rel (0) target = $region13
    $region12: #{forward.1} parent=1 // pred_region
      %s36 = ssub.s32 128, 128
      %37 = vsyncadd [#allocation6], %s36
      %s39 = sshll.u32 [#allocation7], 4
      %s40 = int_to_ptr.vmem [resolvable:$true] %s39
      %42 = dma.hbm_to_vmem [thread:$0]  %s2, 128, %s40, [#allocation6]
    $region13: #{forward.1} parent=1 // pred_fallthru
      _
    // Predicated region
    $region14: #{forward.1} parent=1 // pred_check
      _
    $region15: #{forward.1} parent=1 // pred_check_branch
      %44 = sbr.rel (0) target = $region17
    $region16: #{forward.1} parent=1 // pred_region
      _
    $region17: #{forward.1} parent=1 // pred_fallthru
      _
    // Predicated region
    $region18: #{forward.1} parent=1 // pred_check
      _
    $region19: #{forward.1} parent=1 // pred_check_branch
      %46 = sbr.rel (0) target = $region21
    $region20: #{forward.1} parent=1 // pred_region
      _
    $region21: #{forward.1} parent=1 // pred_fallthru
      _
    // Predicated region
    $region22: #{forward.1} parent=1 // pred_check
      _
    $region23: #{forward.1} parent=1 // pred_check_branch
      %48 = sbr.rel (0) target = $region25
    $region24: #{forward.1} parent=1 // pred_region
      %49 = dma.done [#allocation3], 32
    $region25: #{forward.1} parent=1 // pred_fallthru
      _
    // Predicated region
    $region26: #{forward.1} parent=1 // pred_check
      _
    $region27: #{forward.1} parent=1 // pred_check_branch
      %51 = sbr.rel (0) target = $region29
    $region28: #{forward.1} parent=1 // pred_region
      %52 = dma.done [#allocation6], 32
    $region29: #{forward.1} parent=1 // pred_fallthru
      _
    // Predicated region
    $region30: #{forward.1} parent=1 // pred_check
      _
    $region31: #{forward.1} parent=1 // pred_check_branch
      %54 = sbr.rel (0) target = $region33
    $region32: #{forward.1} parent=1 // pred_region
      %55 = dma.done [#allocation6], 128
    $region33: #{forward.1} parent=1 // pred_fallthru
      _
    %v56 = vld [vmem:[#allocation2] sm:$0x3]
    %v57 = vld [vmem:[#allocation7] sm:$0x3f]
    %v58 = vld [vmem:[#allocation5] sm:$0x3]
    %v59 = vld [vmem:[%s3] sm:$0xf]
    %vm60 = vcmask 31744
    %v62 = vsel %vm60, %v58, 0
    %vm64 = vcmask 1043456
    %v66 = vsel %vm64, %v59, 0
    %68 = vmatprep.subr.mxu0 0.0
    %69 = vmatpush1.msra.mxu0 0.0
    %70 = vmatprep.subr.mxu0 0.0
    %71 = vmatpush1.msra.mxu0 0.0
    %72 = vmatprep.subr.mxu0 0.0
    %73 = vmatpush1.msra.mxu0 0.0
    %74 = vmatprep.subr.mxu0 0.0
    %75 = vmatpush1.msra.mxu0 0.0
    %76 = vmatprep.subr.mxu0 0.0
    %77 = vmatpush1.msra.mxu0 0.0
    %78 = vmatprep.subr.mxu0 0.0
    %79 = vmatpush1.msra.mxu0 0.0
    %80 = vmatprep.subr.mxu0 0.0
    %81 = vmatpush1.msra.mxu0 0.0
    %82 = vmatprep.subr.mxu0 0.0
    %83 = vmatpush1.msra.mxu0 0.0
    %84 = vmatprep.subr.mxu0 0.0
    %85 = vmatpush1.msra.mxu0 0.0
    %86 = vmatprep.subr.mxu0 0.0
    %87 = vmatpush1.msra.mxu0 0.0
    %88 = vmatprep.subr.mxu0 0.0
    %89 = vmatpush1.msra.mxu0 0.0
    %90 = vmatprep.subr.mxu0 0.0
    %91 = vmatpush1.msra.mxu0 0.0
    %92 = vmatprep.subr.mxu0 0.0
    %93 = vmatpush1.msra.mxu0 0.0
    %94 = vmatprep.subr.mxu0 0.0
    %95 = vmatpush1.msra.mxu0 0.0
    %96 = vmatprep.subr.mxu0 0.0
    %97 = vmatpush1.msra.mxu0 0.0
    %98 = vmatprep.subr.mxu0 0.0
    %99 = vmatpush1.msra.mxu0 %v66
    %100 = vmatprep.subr.mxu0 0.0
    %101 = vmatpush2.msra.mxu0 0.0
    %102 = vmatprep.subr.mxu0 0.0
    %103 = vmatpush2.msra.mxu0 0.0
    %104 = vmatprep.subr.mxu0 0.0
    %105 = vmatpush2.msra.mxu0 0.0
    %106 = vmatprep.subr.mxu0 0.0
    %107 = vmatpush2.msra.mxu0 0.0
    %108 = vmatprep.subr.mxu0 0.0
    %109 = vmatpush2.msra.mxu0 0.0
    %110 = vmatprep.subr.mxu0 0.0
    %111 = vmatpush2.msra.mxu0 0.0
    %112 = vmatprep.subr.mxu0 0.0
    %113 = vmatpush2.msra.mxu0 0.0
    %114 = vmatprep.subr.mxu0 0.0
    %115 = vmatpush2.msra.mxu0 0.0
    %116 = vmatprep.subr.mxu0 0.0
    %117 = vmatpush2.msra.mxu0 0.0
    %118 = vmatprep.subr.mxu0 0.0
    %119 = vmatpush2.msra.mxu0 0.0
    %120 = vmatprep.subr.mxu0 0.0
    %121 = vmatpush2.msra.mxu0 0.0
    %122 = vmatprep.subr.mxu0 0.0
    %123 = vmatpush2.msra.mxu0 0.0
    %124 = vmatprep.subr.mxu0 0.0
    %125 = vmatpush2.msra.mxu0 0.0
    %126 = vmatprep.subr.mxu0 0.0
    %127 = vmatpush2.msra.mxu0 0.0
    %128 = vmatprep.subr.mxu0 0.0
    %129 = vmatpush2.msra.mxu0 0.0
    %130 = vmatprep.subr.mxu0 0.0
    %131 = vmatpush2.msra.mxu0 0.0
    %132 = vmatprep.mubr.f32.mxu0 0.0
    %133 = vmatmul.mubr.f32.gmra.mxu0 %v62
    %v134 = vpop.f32.mrf.mxu0
    %v135 = vadd.f32 0.0, %v134
    %v136 = vpop.f32.mrf.mxu0
    %137 = vdwg.mxu0
    %vm138 = vcmask 48128
    %v140 = vsel %vm138, %v56, 0
    %vm142 = vcmask 1045504
    %v144 = vsel %vm142, %v57, 0
    %146 = vmatprep.subr.mxu0 0.0
    %147 = vmatpush1.msra.mxu0 0.0
    %148 = vmatprep.subr.mxu0 0.0
    %149 = vmatpush1.msra.mxu0 0.0
    %150 = vmatprep.subr.mxu0 0.0
    %151 = vmatpush1.msra.mxu0 0.0
    %152 = vmatprep.subr.mxu0 0.0
    %153 = vmatpush1.msra.mxu0 0.0
    %154 = vmatprep.subr.mxu0 0.0
    %155 = vmatpush1.msra.mxu0 0.0
    %156 = vmatprep.subr.mxu0 0.0
    %157 = vmatpush1.msra.mxu0 0.0
    %158 = vmatprep.subr.mxu0 0.0
    %159 = vmatpush1.msra.mxu0 0.0
    %160 = vmatprep.subr.mxu0 0.0
    %161 = vmatpush1.msra.mxu0 0.0
    %162 = vmatprep.subr.mxu0 0.0
    %163 = vmatpush1.msra.mxu0 0.0
    %164 = vmatprep.subr.mxu0 0.0
    %165 = vmatpush1.msra.mxu0 0.0
    %166 = vmatprep.subr.mxu0 0.0
    %167 = vmatpush1.msra.mxu0 0.0
    %168 = vmatprep.subr.mxu0 0.0
    %169 = vmatpush1.msra.mxu0 0.0
    %170 = vmatprep.subr.mxu0 0.0
    %171 = vmatpush1.msra.mxu0 0.0
    %172 = vmatprep.subr.mxu0 0.0
    %173 = vmatpush1.msra.mxu0 0.0
    %174 = vmatprep.subr.mxu0 0.0
    %175 = vmatpush1.msra.mxu0 0.0
    %176 = vmatprep.subr.mxu0 0.0
    %177 = vmatpush1.msra.mxu0 %v144
    %178 = vmatprep.subr.mxu0 0.0
    %179 = vmatpush2.msra.mxu0 0.0
    %180 = vmatprep.subr.mxu0 0.0
    %181 = vmatpush2.msra.mxu0 0.0
    %182 = vmatprep.subr.mxu0 0.0
    %183 = vmatpush2.msra.mxu0 0.0
    %184 = vmatprep.subr.mxu0 0.0
    %185 = vmatpush2.msra.mxu0 0.0
    %186 = vmatprep.subr.mxu0 0.0
    %187 = vmatpush2.msra.mxu0 0.0
    %188 = vmatprep.subr.mxu0 0.0
    %189 = vmatpush2.msra.mxu0 0.0
    %190 = vmatprep.subr.mxu0 0.0
    %191 = vmatpush2.msra.mxu0 0.0
    %192 = vmatprep.subr.mxu0 0.0
    %193 = vmatpush2.msra.mxu0 0.0
    %194 = vmatprep.subr.mxu0 0.0
    %195 = vmatpush2.msra.mxu0 0.0
    %196 = vmatprep.subr.mxu0 0.0
    %197 = vmatpush2.msra.mxu0 0.0
    %198 = vmatprep.subr.mxu0 0.0
    %199 = vmatpush2.msra.mxu0 0.0
    %200 = vmatprep.subr.mxu0 0.0
    %201 = vmatpush2.msra.mxu0 0.0
    %202 = vmatprep.subr.mxu0 0.0
    %203 = vmatpush2.msra.mxu0 0.0
    %204 = vmatprep.subr.mxu0 0.0
    %205 = vmatpush2.msra.mxu0 0.0
    %206 = vmatprep.subr.mxu0 0.0
    %207 = vmatpush2.msra.mxu0 0.0
    %208 = vmatprep.subr.mxu0 0.0
    %209 = vmatpush2.msra.mxu0 0.0
    %210 = vmatprep.mubr.f32.mxu0 0.0
    %211 = vmatmul.mubr.f32.gmra.mxu0 %v140
    %v212 = vpop.f32.mrf.mxu0
    %v213 = vadd.f32 %v135, %v212
    %v214 = vpop.f32.mrf.mxu0
    %215 = vdwg.mxu0
    %v216 = vld [vmem:[%s4] sm:$0x1]
    %v218 = vlaneseq
    %v219 = vshrl.u32 %v218, 7
    %v220 = vsub.s32 0, %v219
    %v221 = vrot.slane %v216, %v220
    %v223 = vadd.f32 %v213, %v221
    %vm224 = vcmask 9216
    %225 = vst.msk [vmem:[#allocation8] sm:$0x3] %vm224, %v223
    // Predicated region
    $region34: #{forward.1} parent=1 // pred_check
      _
    $region35: #{forward.1} parent=1 // pred_check_branch
      %227 = sbr.rel (0) target = $region37
    $region36: #{forward.1} parent=1 // pred_region
      %s229 = ssub.s32 32, 32
      %230 = vsyncadd [#allocation4], %s229
      %s232 = sshll.u32 [#allocation8], 4
      %s233 = int_to_ptr.vmem [resolvable:$true] %s232
      %235 = dma.vmem_to_hbm [thread:$0]  %s233, 32, %s5, [#allocation4]
    $region37: #{forward.1} parent=1 // pred_fallthru
      _
    // Predicated region
    $region38: #{forward.1} parent=1 // pred_check
      _
    $region39: #{forward.1} parent=1 // pred_check_branch
      %237 = sbr.rel (0) target = $region41
    $region40: #{forward.1} parent=1 // pred_region
      %238 = dma.done [#allocation4], 32
    $region41: #{forward.1} parent=1 // pred_fallthru
      _
    %239 = vsyncpa [#allocation3], 1
    %240 = vsyncpa [#allocation6], 1
    %241 = vsyncpa [#allocation4], 1

</llo_original>
